<compile_context>
chip_gen: v7x
topology: tpu7x:2x2x1
jax: 0.10.0
libtpu: 0.0.40
codegen_flags: <defaults>
</compile_context>

<pallas_src>
import functools

import jax
import jax.numpy as jnp
from jax.experimental import pallas as pl
from jax.experimental.pallas import tpu as pltpu


def _conv1d_same_kernel(w_ref, b_ref, x_ref, o_ref, *, C_in, C_out, K, L, pad_l):
    """One batch tile of Conv1d(padding='same', stride=1).

    w_ref: (C_out*C_in*K,) f32 in SMEM (flattened weights, scalar reads)
    b_ref: (C_out,)        f32 in SMEM
    x_ref: (tn, C_in*L)    in VMEM  (batch tile, channels flattened -> dense)
    o_ref: (tn, C_out*L)   in VMEM  (dense output slab)
    """
    tn = x_ref.shape[0]

    # --- Hoist every scalar parameter read out of the MAC loops. -------------
    w = [w_ref[i] for i in range(C_out * C_in * K)]
    b = [b_ref[co] for co in range(C_out)]

    # --- Boundary masks for 'same' padding (shared across all channels). -----
    # tap_d[l] = x[l + d], with out-of-range lanes zeroed.  One lane iota and a
    # pair of compares per distinct shift d; no halo buffer, no extra stores.
    lane = jax.lax.broadcasted_iota(jnp.int32, (tn, L), dimension=1)
    masks = {}
    for k in range(K):
        d = k - pad_l
        if d != 0:
            masks[d] = (lane >= -d) & (lane < L - d)

    # --- Upcast each input channel once to a dense (tn, L) f32 slab. ---------
    # (Lane-aligned slices when L % 128 == 0.)
    xs = [x_ref[:, ci * L:(ci + 1) * L].astype(jnp.float32) for ci in range(C_in)]

    # --- Shifted taps via XLU lane rotation, masked at the boundary. ---------
    taps = []
    for ci in range(C_in):
        ch_taps = []
        for k in range(K):
            d = k - pad_l
            if d == 0:
                ch_taps.append(xs[ci])
            else:
                rolled = pltpu.roll(xs[ci], shift=(-d) % L, axis=1)
                ch_taps.append(jnp.where(masks[d], rolled, 0.0))
        taps.append(ch_taps)

    # --- MAC on the VPU (f32 accumulation), dense output store. --------------
    # NOTE: keep off the MXU at this shape; for C_in/C_out >= ~32 switch to an
    # im2col jnp.dot(..., preferred_element_type=jnp.float32) instead.
    for co in range(C_out):
        acc = jnp.zeros((tn, L), jnp.float32)
        for ci in range(C_in):
            base = (co * C_in + ci) * K
            for k in range(K):
                acc = acc + w[base + k] * taps[ci][k]
        o_ref[:, co * L:(co + 1) * L] = (acc + b[co]).astype(o_ref.dtype)


def _vmem_budget():
    """(vmem_limit_bytes, block budget bytes), per TPU generation."""
    try:
        info = pltpu.get_tpu_info()
        cap = getattr(info, "vmem_capacity_bytes", None)
    except Exception:
        cap = None
    if cap is not None and cap <= 96 * 1024 * 1024:      # v7x-class: 64 MiB / TC
        return 48 * 1024 * 1024, 20 * 1024 * 1024
    if cap is not None:                                  # v5e / v6e: 128 MiB
        return 64 * 1024 * 1024, 32 * 1024 * 1024
    return 32 * 1024 * 1024, 12 * 1024 * 1024            # unknown: conservative


def _pick_batch_tile(N, C_in, C_out, L, K, itemsize, budget_bytes):
    """Batch tile size: fits an honest VMEM estimate, keeps >=2 (ideally >=4)
    grid steps for v7x's two TensorCores + pipelining, divides N, and keeps the
    sublane axis aligned (multiple of 8/16/32 by dtype, or the full batch)."""
    # Honest per-row accounting: double-buffered in/out blocks + f32 temporaries
    # (channel upcasts, masks, one rolled tap, accumulator).
    per_row = (2 * C_in * L * itemsize + 2 * C_out * L * itemsize
               + (C_in + K + C_out + 2) * L * 4)
    cap_budget = max(1, budget_bytes // max(per_row, 1))
    cap_steps = max(1, N // 4) if N >= 4 else max(1, N // 2)
    cap = min(N, cap_budget, cap_steps)

    sublane_align = max(8, 32 // max(itemsize, 1))       # 8 f32, 16 bf16, 32 i8
    best = None
    for d in range(1, N + 1):
        if N % d == 0 and (d % sublane_align == 0 or d == N):
            if d <= cap:
                best = d                                  # largest aligned divisor <= cap
            elif best is None:
                best = d                                  # smallest legal one otherwise
                break
    return best if best is not None else N


def conv1d_same(x, weight, bias, *, tn=None):
    """x: (N, C_in, L); weight: (C_out, C_in, K); bias: (C_out,).
    Returns (N, C_out, L), matching nn.Conv1d(..., stride=1, padding='same')."""
    N, C_in, L = x.shape
    C_out, c_in_w, K = weight.shape
    assert c_in_w == C_in, (c_in_w, C_in)

    pad_l = (K - 1) // 2        # PyTorch 'same': left = (K-1)//2, extra on right

    # Contiguous, layout-preserving reshapes only (no HBM transpose / pad):
    x2d = x.reshape(N, C_in * L)                      # dense sublanes for loads
    w_flat = weight.reshape(-1).astype(jnp.float32)   # tiny -> SMEM scalars
    b_flat = bias.reshape(-1).astype(jnp.float32)

    vmem_limit, budget = _vmem_budget()
    if tn is None:
        tn = _pick_batch_tile(N, C_in, C_out, L, K,
                              jnp.dtype(x.dtype).itemsize, budget)
    assert N % tn == 0, (N, tn)

    kernel = functools.partial(_conv1d_same_kernel,
                               C_in=C_in, C_out=C_out, K=K, L=L, pad_l=pad_l)

    out2d = pl.pallas_call(
        kernel,
        out_shape=jax.ShapeDtypeStruct((N, C_out * L), x.dtype),
        grid=(N // tn,),
        in_specs=[
            pl.BlockSpec(memory_space=pltpu.MemorySpace.SMEM),   # weights
            pl.BlockSpec(memory_space=pltpu.MemorySpace.SMEM),   # bias
            pl.BlockSpec((tn, C_in * L), lambda i: (i, 0)),      # x batch tile
        ],
        out_specs=pl.BlockSpec((tn, C_out * L), lambda i: (i, 0)),
        compiler_params=pltpu.CompilerParams(
            dimension_semantics=("parallel",),   # shard batch tiles across TCs (v7x)
            vmem_limit_bytes=vmem_limit,
        ),
    )(w_flat, b_flat, x2d)

    return out2d.reshape(N, C_out, L)


if __name__ == "__main__":
    # Module hyperparameters (defaults from ConvLayer.__init__)
    kernel_size, stride, in_channels, out_channels = 3, 1, 2, 1
    N, L = 64, 256          # multi-step grid, lane-aligned channel slices

    key = jax.random.PRNGKey(0)
    kx, kw, kb = jax.random.split(key, 3)

    # Deterministic parameter init with PyTorch Conv1d's fan-in uniform bound.
    bound = 1.0 / float(in_channels * kernel_size) ** 0.5
    weight = jax.random.uniform(
        kw, (out_channels, in_channels, kernel_size), jnp.float32, -bound, bound)
    bias = jax.random.uniform(kb, (out_channels,), jnp.float32, -bound, bound)
    x = jax.random.normal(kx, (N, in_channels, L), jnp.float32)

    pad_l = (kernel_size - 1) // 2
    pad_r = (kernel_size - 1) - pad_l

    def ref(xv, wv, bv):
        return jax.lax.conv_general_dilated(
            xv, wv, window_strides=(1,), padding=[(pad_l, pad_r)],
            dimension_numbers=("NCH", "OIH", "NCH")) + bv[None, :, None]

    # f32 path
    y = jax.block_until_ready(conv1d_same(x, weight, bias))
    assert y.shape == (N, out_channels, L), y.shape
    assert jnp.allclose(y, ref(x, weight, bias), atol=1e-5, rtol=1e-5), \
        "f32 mismatch vs reference"

    # bf16 streaming path (half the HBM bytes; f32 accumulation inside kernel)
    x_bf16 = x.astype(jnp.bfloat16)
    y_bf16 = jax.block_until_ready(conv1d_same(x_bf16, weight, bias))
    assert y_bf16.dtype == jnp.bfloat16
    y_bf16_ref = ref(x_bf16.astype(jnp.float32), weight, bias)
    assert jnp.allclose(y_bf16.astype(jnp.float32), y_bf16_ref,
                        atol=5e-2, rtol=5e-2), "bf16 mismatch vs reference"

    print("KERNEL_OK")
</pallas_src>

<mosaic_0001>
module attributes {stable_mosaic.version = 11 : i64} {
  func.func @_conv1d_same_kernel(%arg0: i32, %arg1: memref<6xf32, #tpu.memory_space<smem>>, %arg2: memref<1xf32, #tpu.memory_space<smem>>, %arg3: memref<16x512xf32, #tpu.memory_space<vmem>>, %arg4: memref<16x256xf32, #tpu.memory_space<vmem>>) attributes {dimension_semantics = [#tpu.dimension_semantics<parallel>], iteration_bounds = array<i64: 4>, scalar_prefetch = 0 : i64, scratch_operands = 0 : i64, tpu.core_type = #tpu.core_type<tc>, window_params = [{transform_indices = @transform_0, window_bounds = array<i64: 6>}, {transform_indices = @transform_1, window_bounds = array<i64: 1>}, {transform_indices = @transform_2, window_bounds = array<i64: 16, 512>}, {transform_indices = @transform_3, window_bounds = array<i64: 16, 256>}]} {
    %c0 = arith.constant 0 : index
    %0 = memref.load %arg1[%c0] : memref<6xf32, #tpu.memory_space<smem>>
    %c1 = arith.constant 1 : index
    %1 = memref.load %arg1[%c1] : memref<6xf32, #tpu.memory_space<smem>>
    %c2 = arith.constant 2 : index
    %2 = memref.load %arg1[%c2] : memref<6xf32, #tpu.memory_space<smem>>
    %c3 = arith.constant 3 : index
    %3 = memref.load %arg1[%c3] : memref<6xf32, #tpu.memory_space<smem>>
    %c4 = arith.constant 4 : index
    %4 = memref.load %arg1[%c4] : memref<6xf32, #tpu.memory_space<smem>>
    %c5 = arith.constant 5 : index
    %5 = memref.load %arg1[%c5] : memref<6xf32, #tpu.memory_space<smem>>
    %c0_0 = arith.constant 0 : index
    %6 = memref.load %arg2[%c0_0] : memref<1xf32, #tpu.memory_space<smem>>
    %7 = tpu.iota {dimensions = array<i32: 1>} : vector<16x256xi32>
    %c1_i32 = arith.constant 1 : i32
    %8 = vector.broadcast %c1_i32 : i32 to vector<16x256xi32>
    %9 = arith.cmpi sge, %7, %8 : vector<16x256xi32>
    %c257_i32 = arith.constant 257 : i32
    %10 = vector.broadcast %c257_i32 : i32 to vector<16x256xi32>
    %11 = arith.cmpi slt, %7, %10 : vector<16x256xi32>
    %12 = arith.andi %9, %11 : vector<16x256xi1>
    %c-1_i32 = arith.constant -1 : i32
    %13 = vector.broadcast %c-1_i32 : i32 to vector<16x256xi32>
    %14 = arith.cmpi sge, %7, %13 : vector<16x256xi32>
    %c255_i32 = arith.constant 255 : i32
    %15 = vector.broadcast %c255_i32 : i32 to vector<16x256xi32>
    %16 = arith.cmpi slt, %7, %15 : vector<16x256xi32>
    %17 = arith.andi %14, %16 : vector<16x256xi1>
    %c0_1 = arith.constant 0 : index
    %c0_2 = arith.constant 0 : index
    %18 = vector.load %arg3[%c0_1, %c0_2] : memref<16x512xf32, #tpu.memory_space<vmem>>, vector<16x256xf32>
    %c0_3 = arith.constant 0 : index
    %c256 = arith.constant 256 : index
    %19 = vector.load %arg3[%c0_3, %c256] : memref<16x512xf32, #tpu.memory_space<vmem>>, vector<16x256xf32>
    %c1_i32_4 = arith.constant 1 : i32
    %20 = tpu.dynamic_rotate %18 by %c1_i32_4 dim 1 : vector<16x256xf32>, i32 -> vector<16x256xf32>
    %cst = arith.constant 0.000000e+00 : f32
    %21 = vector.broadcast %cst : f32 to vector<16x256xf32>
    %22 = arith.select %12, %20, %21 : vector<16x256xi1>, vector<16x256xf32>
    %c255_i32_5 = arith.constant 255 : i32
    %23 = tpu.dynamic_rotate %18 by %c255_i32_5 dim 1 : vector<16x256xf32>, i32 -> vector<16x256xf32>
    %cst_6 = arith.constant 0.000000e+00 : f32
    %24 = vector.broadcast %cst_6 : f32 to vector<16x256xf32>
    %25 = arith.select %17, %23, %24 : vector<16x256xi1>, vector<16x256xf32>
    %c1_i32_7 = arith.constant 1 : i32
    %26 = tpu.dynamic_rotate %19 by %c1_i32_7 dim 1 : vector<16x256xf32>, i32 -> vector<16x256xf32>
    %cst_8 = arith.constant 0.000000e+00 : f32
    %27 = vector.broadcast %cst_8 : f32 to vector<16x256xf32>
    %28 = arith.select %12, %26, %27 : vector<16x256xi1>, vector<16x256xf32>
    %c255_i32_9 = arith.constant 255 : i32
    %29 = tpu.dynamic_rotate %19 by %c255_i32_9 dim 1 : vector<16x256xf32>, i32 -> vector<16x256xf32>
    %cst_10 = arith.constant 0.000000e+00 : f32
    %30 = vector.broadcast %cst_10 : f32 to vector<16x256xf32>
    %31 = arith.select %17, %29, %30 : vector<16x256xi1>, vector<16x256xf32>
    %cst_11 = arith.constant 0.000000e+00 : f32
    %32 = vector.broadcast %cst_11 : f32 to vector<16x256xf32>
    %33 = vector.broadcast %0 : f32 to vector<16x256xf32>
    %34 = arith.mulf %33, %22 : vector<16x256xf32>
    %35 = arith.addf %32, %34 : vector<16x256xf32>
    %36 = vector.broadcast %1 : f32 to vector<16x256xf32>
    %37 = arith.mulf %36, %18 : vector<16x256xf32>
    %38 = arith.addf %35, %37 : vector<16x256xf32>
    %39 = vector.broadcast %2 : f32 to vector<16x256xf32>
    %40 = arith.mulf %39, %25 : vector<16x256xf32>
    %41 = arith.addf %38, %40 : vector<16x256xf32>
    %42 = vector.broadcast %3 : f32 to vector<16x256xf32>
    %43 = arith.mulf %42, %28 : vector<16x256xf32>
    %44 = arith.addf %41, %43 : vector<16x256xf32>
    %45 = vector.broadcast %4 : f32 to vector<16x256xf32>
    %46 = arith.mulf %45, %19 : vector<16x256xf32>
    %47 = arith.addf %44, %46 : vector<16x256xf32>
    %48 = vector.broadcast %5 : f32 to vector<16x256xf32>
    %49 = arith.mulf %48, %31 : vector<16x256xf32>
    %50 = arith.addf %47, %49 : vector<16x256xf32>
    %51 = vector.broadcast %6 : f32 to vector<16x256xf32>
    %52 = arith.addf %50, %51 : vector<16x256xf32>
    %c0_12 = arith.constant 0 : index
    %c0_13 = arith.constant 0 : index
    %53 = vector.load %arg4[%c0_12, %c0_13] : memref<16x256xf32, #tpu.memory_space<vmem>>, vector<16x256xf32>
    tpu.vector_store %arg4[%c0_12, %c0_13], %52 {strides = array<i32>} : memref<16x256xf32, #tpu.memory_space<vmem>>, vector<16x256xf32>,
    return
  }
  func.func @transform_0(%arg0: i32) -> i32 {
    %c0_i32 = arith.constant 0 : i32
    %c0_i32_0 = arith.constant 0 : i32
    return %c0_i32 : i32
  }
  func.func @transform_1(%arg0: i32) -> i32 {
    %c0_i32 = arith.constant 0 : i32
    %c0_i32_0 = arith.constant 0 : i32
    return %c0_i32 : i32
  }
  func.func @transform_2(%arg0: i32) -> (i32, i32) {
    %c0_i32 = arith.constant 0 : i32
    %c0_i32_0 = arith.constant 0 : i32
    return %arg0, %c0_i32 : i32, i32
  }
  func.func @transform_3(%arg0: i32) -> (i32, i32) {
    %c0_i32 = arith.constant 0 : i32
    %c0_i32_0 = arith.constant 0 : i32
    return %arg0, %c0_i32 : i32, i32
  }
}

</mosaic_0001>

<llo_original>
// kernel: tpu_custom_call.1
$region0: #{tpu_custom_call.1}
  #allocation0 [shape = 'u32[]', space=smem, size = 0x4, offset = 0x4, fixed_abs, tag = 'smem constant byte address 0x4 - core index']
  #allocation1 [shape = 'u32[144,128]{1,0:T(1,128)}', space=vmem, size = 0x12000, scoped, tag = 'internal scratch']
  #allocation2 [shape = 'f32[1]{0:T(128)S(6)}', space=smem, size = 0x200, scoped, tag = 'scoped memory for tpu_custom_call.1']
  %s0 = inlined_call_operand.vmem [shape: f32[6], index: 0, kind: input, shape index: {}]
  %s1 = inlined_call_operand.<no memory space> [shape: f32[1], index: 1, kind: input, shape index: {}]
  %s2 = inlined_call_operand.hbm [shape: f32[64,512], index: 2, kind: input, shape index: {}]
  %s3 = inlined_call_operand.hbm [shape: f32[64,256], index: 3, kind: output, shape index: {}]
  %s4 = sld [smem:[#allocation0]]
  $region53: #{tpu_custom_call.1} parent=0
    _
  %s6 = ssub.s32 1, %s4
  %s7 = scalar_select 0, %s6, %s4
  %8 = sst [smem:[#allocation2]] %s1
  $region1: #{tpu_custom_call.1} parent=0
    #allocation3 [shape = 'u8[512]{0}', space=smem, size = 0x200, scoped, tag = 'input window, operand 0, single buffered']
    #allocation4 [shape = 's32[2]{0}', space=sflag, size = 0x8, scoped, tag = 'scoped memory for tpu_custom_call.1']
    #allocation5 [shape = 's32[2]{0}', space=sflag, size = 0x8, scoped, tag = 'scoped memory for tpu_custom_call.1']
    #allocation6 [shape = 's32[2]{0}', space=sflag, size = 0x8, scoped, tag = 'scoped memory for tpu_custom_call.1']
    #allocation7 [shape = 'u8[65536]{0}', space=vmem, size = 0x10000, scoped, tag = 'input window, operand 2']
    #allocation8 [shape = 'u8[32768]{0}', space=vmem, size = 0x8000, scoped, tag = 'output window, operand 0']
    %9 = vsyncpa [#allocation6], 0
    %10 = vsyncpa [#allocation4], 0
    %s11 = scalar_lea.sflag [#allocation4], 1
    %12 = vsyncpa %s11, 0
    %13 = vsyncpa [#allocation5], 0
    %s14 = scalar_lea.sflag [#allocation5], 1
    %15 = vsyncpa %s14, 0
    loop: start=0, step=1, limit=6
    $region2: #{tpu_custom_call.1} parent=1 // loop_pre_header
      _
    $region3: #{tpu_custom_call.1} parent=1 // loop_header
      %s17 = sphi 0, %s21
      %p18 = scmp.ge.s32.totalorder %s17, 6
      %s25 = sphi 0, %s25
      %s27 = sphi 0, %s25
      %s28 = sphi 0, %s27
      %s42 = sphi 0, %s28
      %s46 = sphi 0, %s46
      %s48 = sphi 0, %s46
      %s49 = sphi 0, %s48
      %s63 = sphi 0, %s49
      %s69 = sphi 0, %s71
      %s72 = sphi 0, %s69
      %s73 = sphi 0, %s72
      %s89 = sphi 0, %s73
      %s95 = sphi 0, %s97
      %s98 = sphi 0, %s95
      %s99 = sphi 0, %s98
      %s115 = sphi 0, %s99
    $region4: #{tpu_custom_call.1} parent=1 // loop_header_branch
      %20 = sbr.rel (%p18) target = $region8
    $region5: #{tpu_custom_call.1} parent=1 // loop_body
      %s22 = ssub.s32 %s17, 1
      %s23 = ssub.s32 %s17, 2
      %s24 = sadd.s32 %s17, 1
      %s26 = sadd.s32 %s25, 1
      %p29 = scmp.eq.s32.totalorder %s17, 3
      %p30 = scmp.ne.s32.totalorder %s25, %s27
      %p31 = scmp.eq.s32.totalorder %s17, 0
      %p32 = por %p30, %p31
      %p33 = scmp.ne.s32.totalorder %s25, %s27
      %p34 = scmp.eq.s32.totalorder %s22, 3
      %p35 = por %p33, %p34
      %p36 = scmp.ne.s32.totalorder %s27, %s28
      %p37 = scmp.eq.s32.totalorder %s22, 0
      %p38 = por %p36, %p37
      %p39 = scmp.ne.s32.totalorder %s27, %s28
      %p40 = scmp.eq.s32.totalorder %s23, 3
      %p41 = por %p39, %p40
      %p43 = scmp.ne.s32.totalorder %s28, %s42
      %p44 = scmp.eq.s32.totalorder %s23, 0
      %p45 = por %p43, %p44
      %s47 = sadd.s32 %s46, 1
      %p50 = scmp.eq.s32.totalorder %s17, 3
      %p51 = scmp.ne.s32.totalorder %s46, %s48
      %p52 = scmp.eq.s32.totalorder %s17, 0
      %p53 = por %p51, %p52
      %p54 = scmp.ne.s32.totalorder %s46, %s48
      %p55 = scmp.eq.s32.totalorder %s22, 3
      %p56 = por %p54, %p55
      %p57 = scmp.ne.s32.totalorder %s48, %s49
      %p58 = scmp.eq.s32.totalorder %s22, 0
      %p59 = por %p57, %p58
      %p60 = scmp.ne.s32.totalorder %s48, %s49
      %p61 = scmp.eq.s32.totalorder %s23, 3
      %p62 = por %p60, %p61
      %p64 = scmp.ne.s32.totalorder %s49, %s63
      %p65 = scmp.eq.s32.totalorder %s23, 0
      %p66 = por %p64, %p65
      %s67 = ssub.s32 %s17, %s24
      %p68 = scmp.eq.s32.totalorder %s67, 0
      %s70 = sadd.s32 %s69, 1
      %s71 = scalar_select %p68, %s69, %s70
      %p74 = pneg %p68
      %p75 = scmp.eq.s32.totalorder %s17, 3
      %p76 = por %p74, %p75
      %p77 = scmp.ne.s32.totalorder %s69, %s72
      %p78 = scmp.eq.s32.totalorder %s17, 0
      %p79 = por %p77, %p78
      %p80 = scmp.ne.s32.totalorder %s69, %s72
      %p81 = scmp.eq.s32.totalorder %s22, 3
      %p82 = por %p80, %p81
      %p83 = scmp.ne.s32.totalorder %s72, %s73
      %p84 = scmp.eq.s32.totalorder %s22, 0
      %p85 = por %p83, %p84
      %p86 = scmp.ne.s32.totalorder %s72, %s73
      %p87 = scmp.eq.s32.totalorder %s23, 3
      %p88 = por %p86, %p87
      %p90 = scmp.ne.s32.totalorder %s73, %s89
      %p91 = scmp.eq.s32.totalorder %s23, 0
      %p92 = por %p90, %p91
      %s93 = ssub.s32 %s17, %s24
      %p94 = scmp.eq.s32.totalorder %s93, 0
      %s96 = sadd.s32 %s95, 1
      %s97 = scalar_select %p94, %s95, %s96
      %p100 = pneg %p94
      %p101 = scmp.eq.s32.totalorder %s17, 3
      %p102 = por %p100, %p101
      %p103 = scmp.ne.s32.totalorder %s95, %s98
      %p104 = scmp.eq.s32.totalorder %s17, 0
      %p105 = por %p103, %p104
      %p106 = scmp.ne.s32.totalorder %s95, %s98
      %p107 = scmp.eq.s32.totalorder %s22, 3
      %p108 = por %p106, %p107
      %p109 = scmp.ne.s32.totalorder %s98, %s99
      %p110 = scmp.eq.s32.totalorder %s22, 0
      %p111 = por %p109, %p110
      %p112 = scmp.ne.s32.totalorder %s98, %s99
      %p113 = scmp.eq.s32.totalorder %s23, 3
      %p114 = por %p112, %p113
      %p116 = scmp.ne.s32.totalorder %s99, %s115
      %p117 = scmp.eq.s32.totalorder %s23, 0
      %p118 = por %p116, %p117
      %p119 = scmp.le.s32.totalorder 1, %s17
      %p120 = scmp.lt.s32.totalorder %s17, 5
      %p121 = pnand %p119, %p120
      %p122 = pneg %p121
      // Predicated region
      $region9: #{tpu_custom_call.1} parent=5 // pred_check
        _
      $region10: #{tpu_custom_call.1} parent=5 // pred_check_branch
        %124 = sbr.rel (%p121) target = $region12
      $region11: #{tpu_custom_call.1} parent=5 // pred_region
        %s125 = ssub.s32 %s17, 1
        // Predicated region
        $region13: #{tpu_custom_call.1} parent=11 // pred_check
          %p126 = pneg %p38
        $region14: #{tpu_custom_call.1} parent=11 // pred_check_branch
          %128 = sbr.rel (%p126) target = $region16
        $region15: #{tpu_custom_call.1} parent=11 // pred_region
          %s130 = ssub.s32 16, 16
          %131 = vsyncadd [#allocation6], %s130
          %s133 = sshll.u32 %s0, 4
          %s134 = int_to_ptr.vmem [resolvable:$true] %s133
          %136 = dma.vmem_to_smem %s134, 16, [#allocation3], [#allocation6]
        $region16: #{tpu_custom_call.1} parent=11 // pred_fallthru
          _
        // Predicated region
        $region17: #{tpu_custom_call.1} parent=11 // pred_check
          %p137 = pneg %p59
        $region18: #{tpu_custom_call.1} parent=11 // pred_check_branch
          %139 = sbr.rel (%p137) target = $region20
        $region19: #{tpu_custom_call.1} parent=11 // pred_region
          _
        $region20: #{tpu_custom_call.1} parent=11 // pred_fallthru
          _
      $region12: #{tpu_custom_call.1} parent=5 // pred_fallthru
        _
      %p140 = scmp.lt.s32.totalorder %s17, 4
      // Predicated region
      $region21: #{tpu_custom_call.1} parent=5 // pred_check
        %p141 = pneg %p140
      $region22: #{tpu_custom_call.1} parent=5 // pred_check_branch
        %143 = sbr.rel (%p141) target = $region24
      $region23: #{tpu_custom_call.1} parent=5 // pred_region
        // Predicated region
        $region25: #{tpu_custom_call.1} parent=23 // pred_check
          %p144 = pneg %p79
        $region26: #{tpu_custom_call.1} parent=23 // pred_check_branch
          %146 = sbr.rel (%p144) target = $region28
        $region27: #{tpu_custom_call.1} parent=23 // pred_region
          %s147 = sand.u32 %s69, 1
          %s148 = scalar_lea.sflag [#allocation4], %s147
          %s149 = sand.u32 %s69, 1
          %s150 = smul.addr %s149, 64
          %s151 = scalar_lea.vmem [#allocation7], %s150
          %s152 = smul.u32 2, %s17
          %s154 = ssub.s32 1024, 1024
          %155 = vsyncadd %s148, %s154
          %s156 = smul.addr %s152, 4
          %s157 = smul.addr %s156, 128
          %s158 = scalar_lea.hbm %s2, %s157
          %s159 = sshll.u32 %s151, 4
          %s160 = int_to_ptr.vmem [resolvable:$true] %s159
          %165 = dma.hbm_to_vmem [thread:$0]  %s158, 1024, %s160, %s148, 512, 512, 32
        $region28: #{tpu_custom_call.1} parent=23 // pred_fallthru
          _
      $region24: #{tpu_custom_call.1} parent=5 // pred_fallthru
        _
      %p166 = scmp.le.s32.totalorder 1, %s17
      %p167 = scmp.lt.s32.totalorder %s17, 5
      %p168 = pnand %p166, %p167
      %p169 = pneg %p168
      // Predicated region
      $region29: #{tpu_custom_call.1} parent=5 // pred_check
        _
      $region30: #{tpu_custom_call.1} parent=5 // pred_check_branch
        %171 = sbr.rel (%p168) target = $region32
      $region31: #{tpu_custom_call.1} parent=5 // pred_region
        %s172 = ssub.s32 %s17, 1
        // Predicated region
        $region33: #{tpu_custom_call.1} parent=31 // pred_check
          %p173 = pneg %p38
        $region34: #{tpu_custom_call.1} parent=31 // pred_check_branch
          %175 = sbr.rel (%p173) target = $region36
        $region35: #{tpu_custom_call.1} parent=31 // pred_region
          %176 = dma.done [#allocation6], 16
        $region36: #{tpu_custom_call.1} parent=31 // pred_fallthru
          _
        %s177 = sand.u32 %s72, 1
        %s178 = scalar_lea.sflag [#allocation4], %s177
        %s179 = sand.u32 %s72, 1
        %s180 = smul.addr %s179, 64
        %s181 = scalar_lea.vmem [#allocation7], %s180
        // Predicated region
        $region37: #{tpu_custom_call.1} parent=31 // pred_check
          %p182 = pneg %p85
        $region38: #{tpu_custom_call.1} parent=31 // pred_check_branch
          %184 = sbr.rel (%p182) target = $region40
        $region39: #{tpu_custom_call.1} parent=31 // pred_region
          %185 = dma.done %s178, 1024
        $region40: #{tpu_custom_call.1} parent=31 // pred_fallthru
          _
        %186 = sfence
        %p187 = pneg %p38
        %p188 = pneg %p35
        %p189 = pneg %p59
        %p190 = pneg %p56
        %s191 = sand.u32 %s72, 1
        %s192 = scalar_lea.sflag [#allocation4], %s191
        %s193 = sand.u32 %s72, 1
        %s194 = smul.addr %s193, 64
        %s195 = scalar_lea.vmem [#allocation7], %s194
        %p196 = pneg %p85
        %p197 = pneg %p82
        %p198 = pneg %p111
        %p199 = pneg %p108
        %s200 = sand.u32 %s98, 1
        %s201 = scalar_lea.sflag [#allocation5], %s200
        %s202 = sand.u32 %s98, 1
        %s203 = smul.addr %s202, 32
        %s204 = scalar_lea.vmem [#allocation8], %s203
        %s205 = smul.u32 2, %s22
        %s206 = smul.u32 2, %s22
        %s207 = sld [smem:[#allocation3]]
        %s208 = sld [smem:[#allocation3 + $0x1]]
        %s209 = sld [smem:[#allocation3 + $0x2]]
        %s210 = sld [smem:[#allocation3 + $0x3]]
        %s211 = sld [smem:[#allocation3 + $0x4]]
        %s212 = sld [smem:[#allocation3 + $0x5]]
        %s213 = sld [smem:[#allocation2]]
        %v214 = vlaneseq
        %v215 = vand.u32 %v214, 127
        %v216 = vadd.s32 %v215, 128
        %vm217 = vcmp.ge.s32.totalorder %v215, 1
        %vm218 = vcmp.ge.s32.totalorder %v216, 1
        %vm219 = vcmp.lt.s32.totalorder %v215, 257
        %vm220 = vcmp.lt.s32.totalorder %v216, 257
        %vm221 = vmand %vm217, %vm219
        %vm222 = vmand %vm218, %vm220
        %vm223 = vcmp.ge.s32.totalorder %v215, 4294967295
        %vm224 = vcmp.ge.s32.totalorder %v216, 4294967295
        %vm225 = vcmp.lt.s32.totalorder %v215, 255
        %vm226 = vcmp.lt.s32.totalorder %v216, 255
        %vm227 = vmand %vm223, %vm225
        %vm228 = vmand %vm224, %vm226
        %v229 = vld [vmem:[%s181] sm:$0xff]
        %v230 = vld [vmem:[%s181 + $0x8] sm:$0xff]
        %v231 = vld [vmem:[%s181 + $0x20] sm:$0xff]
        %v232 = vld [vmem:[%s181 + $0x28] sm:$0xff]
        %v233 = vld [vmem:[%s181 + $0x10] sm:$0xff]
        %v234 = vld [vmem:[%s181 + $0x18] sm:$0xff]
        %v235 = vld [vmem:[%s181 + $0x30] sm:$0xff]
        %v236 = vld [vmem:[%s181 + $0x38] sm:$0xff]
        %237 = vrot.lane.b32.xlu0 %v229, 1
        %v238 = vpop.permute.xlu0 %237
        %239 = vrot.lane.b32.xlu0 %v231, 1
        %v240 = vpop.permute.xlu0 %239
        %241 = vrot.lane.b32.xlu0 %v230, 1
        %v242 = vpop.permute.xlu0 %241
        %243 = vrot.lane.b32.xlu0 %v232, 1
        %v244 = vpop.permute.xlu0 %243
        %vm245 = vcmp.lt.s32.totalorder %v215, 1
        %v246 = vsel %vm245, %v238, %v242
        %v247 = vsel %vm245, %v240, %v244
        %v248 = vsel %vm245, %v242, %v238
        %v249 = vsel %vm245, %v244, %v240
        %v250 = vsel %vm221, %v248, 0.0
        %v251 = vsel %vm222, %v246, 0.0
        %v252 = vsel %vm221, %v249, 0.0
        %v253 = vsel %vm222, %v247, 0.0
        %254 = vrot.lane.b32.xlu0 %v229, 127
        %v255 = vpop.permute.xlu0 %254
        %256 = vrot.lane.b32.xlu0 %v231, 127
        %v257 = vpop.permute.xlu0 %256
        %258 = vrot.lane.b32.xlu0 %v230, 127
        %v259 = vpop.permute.xlu0 %258
        %260 = vrot.lane.b32.xlu0 %v232, 127
        %v261 = vpop.permute.xlu0 %260
        %vm262 = vcmp.lt.s32.totalorder %v215, 127
        %v263 = vsel %vm262, %v255, %v259
        %v264 = vsel %vm262, %v257, %v261
        %v265 = vsel %vm262, %v259, %v255
        %v266 = vsel %vm262, %v261, %v257
        %v267 = vsel %vm227, %v263, 0.0
        %v268 = vsel %vm228, %v265, 0.0
        %v269 = vsel %vm227, %v264, 0.0
        %v270 = vsel %vm228, %v266, 0.0
        %271 = vrot.lane.b32.xlu0 %v233, 1
        %v272 = vpop.permute.xlu0 %271
        %273 = vrot.lane.b32.xlu0 %v235, 1
        %v274 = vpop.permute.xlu0 %273
        %275 = vrot.lane.b32.xlu0 %v234, 1
        %v276 = vpop.permute.xlu0 %275
        %277 = vrot.lane.b32.xlu0 %v236, 1
        %v278 = vpop.permute.xlu0 %277
        %v279 = vsel %vm245, %v272, %v276
        %v280 = vsel %vm245, %v274, %v278
        %v281 = vsel %vm245, %v276, %v272
        %v282 = vsel %vm245, %v278, %v274
        %v283 = vsel %vm221, %v281, 0.0
        %v284 = vsel %vm222, %v279, 0.0
        %v285 = vsel %vm221, %v282, 0.0
        %v286 = vsel %vm222, %v280, 0.0
        %287 = vrot.lane.b32.xlu0 %v233, 127
        %v288 = vpop.permute.xlu0 %287
        %289 = vrot.lane.b32.xlu0 %v235, 127
        %v290 = vpop.permute.xlu0 %289
        %291 = vrot.lane.b32.xlu0 %v234, 127
        %v292 = vpop.permute.xlu0 %291
        %293 = vrot.lane.b32.xlu0 %v236, 127
        %v294 = vpop.permute.xlu0 %293
        %v295 = vsel %vm262, %v288, %v292
        %v296 = vsel %vm262, %v290, %v294
        %v297 = vsel %vm262, %v292, %v288
        %v298 = vsel %vm262, %v294, %v290
        %v299 = vsel %vm227, %v295, 0.0
        %v300 = vsel %vm228, %v297, 0.0
        %v301 = vsel %vm227, %v296, 0.0
        %v302 = vsel %vm228, %v298, 0.0
        %v303 = vstv %s207
        %v304 = vmul.f32 %v303, %v250
        %v305 = vmul.f32 %v303, %v251
        %v306 = vmul.f32 %v303, %v252
        %v307 = vmul.f32 %v303, %v253
        %v308 = vadd.f32 %v304, 0.0
        %v309 = vadd.f32 %v305, 0.0
        %v310 = vadd.f32 %v306, 0.0
        %v311 = vadd.f32 %v307, 0.0
        %v312 = vstv %s208
        %v313 = vmul.f32 %v312, %v229
        %v314 = vmul.f32 %v312, %v230
        %v315 = vmul.f32 %v312, %v231
        %v316 = vmul.f32 %v312, %v232
        %v317 = vadd.f32 %v308, %v313
        %v318 = vadd.f32 %v309, %v314
        %v319 = vadd.f32 %v310, %v315
        %v320 = vadd.f32 %v311, %v316
        %v321 = vstv %s209
        %v322 = vmul.f32 %v321, %v267
        %v323 = vmul.f32 %v321, %v268
        %v324 = vmul.f32 %v321, %v269
        %v325 = vmul.f32 %v321, %v270
        %v326 = vadd.f32 %v317, %v322
        %v327 = vadd.f32 %v318, %v323
        %v328 = vadd.f32 %v319, %v324
        %v329 = vadd.f32 %v320, %v325
        %v330 = vstv %s210
        %v331 = vmul.f32 %v330, %v283
        %v332 = vmul.f32 %v330, %v284
        %v333 = vmul.f32 %v330, %v285
        %v334 = vmul.f32 %v330, %v286
        %v335 = vadd.f32 %v326, %v331
        %v336 = vadd.f32 %v327, %v332
        %v337 = vadd.f32 %v328, %v333
        %v338 = vadd.f32 %v329, %v334
        %v339 = vstv %s211
        %v340 = vmul.f32 %v339, %v233
        %v341 = vmul.f32 %v339, %v234
        %v342 = vmul.f32 %v339, %v235
        %v343 = vmul.f32 %v339, %v236
        %v344 = vadd.f32 %v335, %v340
        %v345 = vadd.f32 %v336, %v341
        %v346 = vadd.f32 %v337, %v342
        %v347 = vadd.f32 %v338, %v343
        %v348 = vstv %s212
        %v349 = vmul.f32 %v348, %v299
        %v350 = vmul.f32 %v348, %v300
        %v351 = vmul.f32 %v348, %v301
        %v352 = vmul.f32 %v348, %v302
        %v353 = vadd.f32 %v344, %v349
        %v354 = vadd.f32 %v345, %v350
        %v355 = vadd.f32 %v346, %v351
        %v356 = vadd.f32 %v347, %v352
        %v357 = vstv %s213
        %v358 = vadd.f32 %v353, %v357
        %v359 = vadd.f32 %v354, %v357
        %v360 = vadd.f32 %v355, %v357
        %v361 = vadd.f32 %v356, %v357
        %362 = vst [vmem:[%s204] sm:$0xff] %v358
        %363 = vst [vmem:[%s204 + $0x8] sm:$0xff] %v359
        %364 = vst [vmem:[%s204 + $0x10] sm:$0xff] %v360
        %365 = vst [vmem:[%s204 + $0x18] sm:$0xff] %v361
        %s366 = sand.u32 %s98, 1
        %s367 = scalar_lea.sflag [#allocation5], %s366
        %s368 = sand.u32 %s98, 1
        %s369 = smul.addr %s368, 32
        %s370 = scalar_lea.vmem [#allocation8], %s369
        // Predicated region
        $region41: #{tpu_custom_call.1} parent=31 // pred_check
          %p371 = pneg %p108
        $region42: #{tpu_custom_call.1} parent=31 // pred_check_branch
          %373 = sbr.rel (%p371) target = $region44
        $region43: #{tpu_custom_call.1} parent=31 // pred_region
          %s374 = smul.u32 2, %s22
          %s376 = ssub.s32 512, 512
          %377 = vsyncadd %s367, %s376
          %s378 = smul.addr %s374, 2
          %s379 = smul.addr %s378, 128
          %s380 = scalar_lea.hbm %s3, %s379
          %s381 = sshll.u32 %s370, 4
          %s382 = int_to_ptr.vmem [resolvable:$true] %s381
          %387 = dma.vmem_to_hbm [thread:$0]  %s382, 512, %s380, %s367, 256, 256, 16
        $region44: #{tpu_custom_call.1} parent=31 // pred_fallthru
          _
      $region32: #{tpu_custom_call.1} parent=5 // pred_fallthru
        _
      %p388 = scmp.le.s32.totalorder 2, %s17
      // Predicated region
      $region45: #{tpu_custom_call.1} parent=5 // pred_check
        %p389 = pneg %p388
      $region46: #{tpu_custom_call.1} parent=5 // pred_check_branch
        %391 = sbr.rel (%p389) target = $region48
      $region47: #{tpu_custom_call.1} parent=5 // pred_region
        %s392 = ssub.s32 %s17, 2
        // Predicated region
        $region49: #{tpu_custom_call.1} parent=47 // pred_check
          %p393 = pneg %p114
        $region50: #{tpu_custom_call.1} parent=47 // pred_check_branch
          %395 = sbr.rel (%p393) target = $region52
        $region51: #{tpu_custom_call.1} parent=47 // pred_region
          %s396 = sand.u32 %s99, 1
          %s397 = scalar_lea.sflag [#allocation5], %s396
          %s398 = sand.u32 %s99, 1
          %s399 = smul.addr %s398, 32
          %s400 = scalar_lea.vmem [#allocation8], %s399
          %401 = dma.done %s397, 512
        $region52: #{tpu_custom_call.1} parent=47 // pred_fallthru
          _
      $region48: #{tpu_custom_call.1} parent=5 // pred_fallthru
        _
    $region6: #{tpu_custom_call.1} parent=1 // loop_footer
      %s21 = sadd.s32 1, %s17
    $region7: #{tpu_custom_call.1} parent=1 // loop_footer_branch
      %16 = sbr.rel target = $region3
    $region8: #{tpu_custom_call.1} parent=1 // loop_exit
      _
    %402 = vsyncpa [#allocation4], 1
    %s403 = scalar_lea.sflag [#allocation4], 1
    %404 = vsyncpa %s403, 1
    %405 = vsyncpa [#allocation5], 1
    %s406 = scalar_lea.sflag [#allocation5], 1
    %407 = vsyncpa %s406, 1
    %408 = vsyncpa [#allocation6], 1
    %s409 = scalar_lea.sflag [#allocation6], 1
    %410 = vsyncpa %s409, 1

</llo_original>
